<compile_context>
chip_gen: v7x
topology: tpu7x:2x2x1
jax: 0.10.0
libtpu: 0.0.40
codegen_flags: <defaults>
</compile_context>

<pallas_src>
import functools

import jax
import jax.numpy as jnp
from jax import lax
from jax.experimental import pallas as pl
from jax.experimental.pallas import tpu as pltpu

LANE = 128
SUBLANE = 8
ROW_TILE_MAX = 2048  # 2048 x 128 x 4B = 1 MiB per f32 input tile


def _bce_partial_kernel(recon_ref, x_ref, out_ref, *, row_tile, valid_rows,
                        apply_mask):
    """Per-block BCE partial sum, kept vreg-shaped (8, 128)."""
    k = pl.program_id(0)

    p = recon_ref[...].astype(jnp.float32)
    t = x_ref[...].astype(jnp.float32)

    # torch.nn.functional.binary_cross_entropy clamps each log term at -100.
    # NOTE(v7x): the two logs/element are the only EUP work; at 3.2 TB/s HBM
    # the EUP may become the binding slot there — that is the accepted roofline.
    log_p = jnp.maximum(jnp.log(p), -100.0)
    log_1mp = jnp.maximum(jnp.log(1.0 - p), -100.0)
    bce = -(t * log_p + (1.0 - t) * log_1mp)

    if apply_mask:
        # Only the last (partial) block has Pallas-padded rows with unspecified
        # contents; zero them out before the fold (jnp.where is a select, so
        # NaN/Inf garbage in the masked lanes cannot leak through).
        row_ids = k * row_tile + lax.broadcasted_iota(
            jnp.int32, (row_tile, LANE), 0)
        bce = jnp.where(row_ids < valid_rows, bce, 0.0)

    # Fold the tile down to one vreg-shaped partial: (row_tile, 128) ->
    # (row_tile//8, 8, 128) matches vreg boundaries (free reshape), and the
    # leading-axis sum is pure VPU adds — no cross-lane/sublane reduce in the
    # hot loop. The single expensive reduce happens once, outside the kernel.
    partial = jnp.sum(bce.reshape(row_tile // SUBLANE, SUBLANE, LANE), axis=0)
    out_ref[...] = partial.reshape(1, SUBLANE, LANE)


@jax.jit
def vae_loss(recon_x, x, mu, logvar):
    """Pallas implementation of CustomVAELoss.forward (scalar f32 output)."""
    n = recon_x.size
    r_flat = recon_x.reshape(-1)
    x_flat = x.reshape(-1)

    # Conditional pad to a multiple of 8*128 elements. (recon=0, x=0) padding
    # contributes -(0*(-100) + 1*log(1-0)) = 0 to the BCE sum, so it needs no
    # masking. For typical image sizes (numel % 1024 == 0) this branch is dead
    # and no extra HBM pass happens.
    pad = (-n) % (SUBLANE * LANE)
    if pad:
        r_flat = jnp.concatenate([r_flat, jnp.zeros((pad,), r_flat.dtype)])
        x_flat = jnp.concatenate([x_flat, jnp.zeros((pad,), x_flat.dtype)])

    rows = (n + pad) // LANE              # multiple of 8 by construction
    r2 = r_flat.reshape(rows, LANE)
    x2 = x_flat.reshape(rows, LANE)

    row_tile = min(ROW_TILE_MAX, rows)    # multiple of 8 by construction
    num_blocks = (rows + row_tile - 1) // row_tile
    apply_mask = (rows % row_tile) != 0   # only the final block can be ragged

    kernel = functools.partial(
        _bce_partial_kernel,
        row_tile=row_tile, valid_rows=rows, apply_mask=apply_mask)

    # Explicit VMEM budget: 2 inputs x 2 pipeline buffers x tile bytes,
    # + output double-buffer + 1 MiB slack. Stays far under v7x's 64 MiB.
    tile_bytes = row_tile * LANE * r2.dtype.itemsize
    vmem_limit = 2 * 2 * tile_bytes + 2 * SUBLANE * LANE * 4 + (1 << 20)

    partials = pl.pallas_call(
        kernel,
        out_shape=jax.ShapeDtypeStruct((num_blocks, SUBLANE, LANE),
                                       jnp.float32),
        grid_spec=pltpu.PrefetchScalarGridSpec(
            num_scalar_prefetch=0,
            grid=(num_blocks,),
            in_specs=[
                pl.BlockSpec((row_tile, LANE), lambda k: (k, 0)),
                pl.BlockSpec((row_tile, LANE), lambda k: (k, 0)),
            ],
            out_specs=pl.BlockSpec((1, SUBLANE, LANE), lambda k: (k, 0, 0)),
        ),
        compiler_params=pltpu.CompilerParams(
            dimension_semantics=("parallel",),   # shards across v7x's 2 TCs
            vmem_limit_bytes=int(vmem_limit)),
    )(r2, x2)

    # Final combine in plain JAX: one reduce over num_blocks*1024 f32 partials
    # plus the O(B*latent) KLD term — negligible next to the elementwise pass.
    bce = jnp.sum(partials, dtype=jnp.float32)
    mu32 = mu.astype(jnp.float32)
    lv32 = logvar.astype(jnp.float32)
    kld = -0.5 * jnp.sum(1.0 + lv32 - mu32 * mu32 - jnp.exp(lv32))
    return bce + kld


def vae_loss_reference(recon_x, x, mu, logvar):
    """Pure-JAX reference matching torch semantics."""
    recon_x = recon_x.astype(jnp.float32)
    x = x.astype(jnp.float32)
    mu = mu.astype(jnp.float32)
    logvar = logvar.astype(jnp.float32)
    log_p = jnp.maximum(jnp.log(recon_x), -100.0)
    log_1mp = jnp.maximum(jnp.log(1.0 - recon_x), -100.0)
    bce = -jnp.sum(x * log_p + (1.0 - x) * log_1mp)
    kld = -0.5 * jnp.sum(1.0 + logvar - mu * mu - jnp.exp(logvar))
    return bce + kld


if __name__ == "__main__":
    key = jax.random.PRNGKey(0)
    k1, k2, k3, k4 = jax.random.split(key, 4)

    B, C, H, W = 2, 4, 16, 16  # NCHW images (as the torch module would see)
    latent = 32

    recon_x = jax.nn.sigmoid(jax.random.normal(k1, (B, C, H, W), jnp.float32))
    x = jax.random.uniform(k2, (B, C, H, W), jnp.float32)
    mu = jax.random.normal(k3, (B, latent), jnp.float32)
    logvar = 0.1 * jax.random.normal(k4, (B, latent), jnp.float32)

    loss = vae_loss(recon_x, x, mu, logvar)
    jax.block_until_ready(loss)

    ref = vae_loss_reference(recon_x, x, mu, logvar)
    assert jnp.allclose(loss, ref, rtol=1e-5, atol=1e-3), (loss, ref)

    print("KERNEL_OK")
</pallas_src>

<mosaic_0001>
module attributes {stable_mosaic.version = 11 : i64} {
  func.func @_bce_partial_kernel(%arg0: i32, %arg1: memref<16x128xf32, #tpu.memory_space<vmem>>, %arg2: memref<16x128xf32, #tpu.memory_space<vmem>>, %arg3: memref<1x8x128xf32, #tpu.memory_space<vmem>>) attributes {dimension_semantics = [#tpu.dimension_semantics<parallel>], iteration_bounds = array<i64: 1>, scalar_prefetch = 0 : i64, scratch_operands = 0 : i64, tpu.core_type = #tpu.core_type<tc>, window_params = [{transform_indices = @transform_0, window_bounds = array<i64: 16, 128>}, {transform_indices = @transform_1, window_bounds = array<i64: 16, 128>}, {transform_indices = @transform_2, window_bounds = array<i64: 1, 8, 128>}]} {
    %c0 = arith.constant 0 : index
    %c0_0 = arith.constant 0 : index
    %0 = vector.load %arg1[%c0, %c0_0] : memref<16x128xf32, #tpu.memory_space<vmem>>, vector<16x128xf32>
    %c0_1 = arith.constant 0 : index
    %c0_2 = arith.constant 0 : index
    %1 = vector.load %arg2[%c0_1, %c0_2] : memref<16x128xf32, #tpu.memory_space<vmem>>, vector<16x128xf32>
    %2 = math.log %0 : vector<16x128xf32>
    %cst = arith.constant -1.000000e+02 : f32
    %3 = vector.broadcast %cst : f32 to vector<16x128xf32>
    %4 = arith.maximumf %2, %3 : vector<16x128xf32>
    %cst_3 = arith.constant 1.000000e+00 : f32
    %5 = vector.broadcast %cst_3 : f32 to vector<16x128xf32>
    %6 = arith.subf %5, %0 : vector<16x128xf32>
    %7 = math.log %6 : vector<16x128xf32>
    %cst_4 = arith.constant -1.000000e+02 : f32
    %8 = vector.broadcast %cst_4 : f32 to vector<16x128xf32>
    %9 = arith.maximumf %7, %8 : vector<16x128xf32>
    %10 = arith.mulf %1, %4 : vector<16x128xf32>
    %cst_5 = arith.constant 1.000000e+00 : f32
    %11 = vector.broadcast %cst_5 : f32 to vector<16x128xf32>
    %12 = arith.subf %11, %1 : vector<16x128xf32>
    %13 = arith.mulf %12, %9 : vector<16x128xf32>
    %14 = arith.addf %10, %13 : vector<16x128xf32>
    %cst_6 = arith.constant 0.000000e+00 : f32
    %15 = vector.broadcast %cst_6 : f32 to vector<16x128xf32>
    %16 = arith.subf %15, %14 : vector<16x128xf32>
    %17 = vector.shape_cast %16 : vector<16x128xf32> to vector<2x8x128xf32>
    %cst_7 = arith.constant dense<0.000000e+00> : vector<8x128xf32>
    %18 = vector.multi_reduction <add>, %17, %cst_7 [0] : vector<2x8x128xf32> to vector<8x128xf32>
    %19 = vector.shape_cast %18 : vector<8x128xf32> to vector<1x8x128xf32>
    %c0_8 = arith.constant 0 : index
    %c0_9 = arith.constant 0 : index
    %c0_10 = arith.constant 0 : index
    %20 = vector.load %arg3[%c0_8, %c0_9, %c0_10] : memref<1x8x128xf32, #tpu.memory_space<vmem>>, vector<1x8x128xf32>
    tpu.vector_store %arg3[%c0_8, %c0_9, %c0_10], %19 {strides = array<i32>} : memref<1x8x128xf32, #tpu.memory_space<vmem>>, vector<1x8x128xf32>,
    return
  }
  func.func @transform_0(%arg0: i32) -> (i32, i32) {
    %c0_i32 = arith.constant 0 : i32
    %c0_i32_0 = arith.constant 0 : i32
    return %arg0, %c0_i32 : i32, i32
  }
  func.func @transform_1(%arg0: i32) -> (i32, i32) {
    %c0_i32 = arith.constant 0 : i32
    %c0_i32_0 = arith.constant 0 : i32
    return %arg0, %c0_i32 : i32, i32
  }
  func.func @transform_2(%arg0: i32) -> (i32, i32, i32) {
    %c0_i32 = arith.constant 0 : i32
    %c0_i32_0 = arith.constant 0 : i32
    %c0_i32_1 = arith.constant 0 : i32
    return %arg0, %c0_i32, %c0_i32_0 : i32, i32, i32
  }
}

</mosaic_0001>

<llo_original>
// kernel: vae_loss.1
$region0: #{vae_loss.1}
  #allocation0 [shape = 'u32[]', space=smem, size = 0x4, offset = 0x4, fixed_abs, tag = 'smem constant byte address 0x4 - core index']
  #allocation1 [shape = 'u32[144,128]{1,0:T(1,128)}', space=vmem, size = 0x12000, scoped, tag = 'internal scratch']
  %s0 = inlined_call_operand.vmem [shape: f32[16,128], index: 0, kind: input, shape index: {}]
  %s1 = inlined_call_operand.vmem [shape: f32[16,128], index: 1, kind: input, shape index: {}]
  %s2 = inlined_call_operand.vmem [shape: f32[1,8,128], index: 2, kind: output, shape index: {}]
  %s3 = sld [smem:[#allocation0]]
  $region18: #{vae_loss.1} parent=0
    _
  %s5 = ssub.s32 1, %s3
  %s6 = scalar_select 0, %s5, %s3
  // Predicated region
  $region2: #{vae_loss.1} parent=0 // pred_check
    _
  $region3: #{vae_loss.1} parent=0 // pred_check_branch
    %8 = sbr.rel (0) target = $region5
  $region4: #{vae_loss.1} parent=0 // pred_region
    _
  $region5: #{vae_loss.1} parent=0 // pred_fallthru
    _
  // Predicated region
  $region6: #{vae_loss.1} parent=0 // pred_check
    _
  $region7: #{vae_loss.1} parent=0 // pred_check_branch
    %10 = sbr.rel (0) target = $region9
  $region8: #{vae_loss.1} parent=0 // pred_region
    _
  $region9: #{vae_loss.1} parent=0 // pred_fallthru
    _
  %v11 = vld [vmem:[%s0] sm:$0xff]
  %v12 = vld [vmem:[%s0 + $0x8] sm:$0xff]
  %v13 = vld [vmem:[%s1] sm:$0xff]
  %v14 = vld [vmem:[%s1 + $0x8] sm:$0xff]
  %v15 = vlog2.pop %v11
  %v16 = vmul.f32 %v15, 0.6931472
  %v17 = vlog2.pop %v12
  %v18 = vmul.f32 %v17, 0.6931472
  %v19 = vmax.f32 %v16, -100.0
  %v20 = vmax.f32 %v18, -100.0
  %v21 = vsub.f32 1.0, %v11
  %v22 = vsub.f32 1.0, %v12
  %v23 = vlog2.pop %v21
  %v24 = vmul.f32 %v23, 0.6931472
  %v25 = vlog2.pop %v22
  %v26 = vmul.f32 %v25, 0.6931472
  %v27 = vmax.f32 %v24, -100.0
  %v28 = vmax.f32 %v26, -100.0
  %v29 = vmul.f32 %v13, %v19
  %v30 = vmul.f32 %v14, %v20
  %v31 = vsub.f32 1.0, %v13
  %v32 = vsub.f32 1.0, %v14
  %v33 = vmul.f32 %v31, %v27
  %v34 = vmul.f32 %v32, %v28
  %v35 = vadd.f32 %v29, %v33
  %v36 = vadd.f32 %v30, %v34
  %v37 = vsub.f32 0.0, %v35
  %v38 = vsub.f32 0.0, %v36
  %v39 = vadd.f32 %v37, %v38
  %40 = vst [vmem:[%s2] sm:$0xff] %v39
  // Predicated region
  $region10: #{vae_loss.1} parent=0 // pred_check
    _
  $region11: #{vae_loss.1} parent=0 // pred_check_branch
    %42 = sbr.rel (0) target = $region13
  $region12: #{vae_loss.1} parent=0 // pred_region
    _
  $region13: #{vae_loss.1} parent=0 // pred_fallthru
    _
  // Predicated region
  $region14: #{vae_loss.1} parent=0 // pred_check
    _
  $region15: #{vae_loss.1} parent=0 // pred_check_branch
    %44 = sbr.rel (0) target = $region17
  $region16: #{vae_loss.1} parent=0 // pred_region
    _
  $region17: #{vae_loss.1} parent=0 // pred_fallthru
    _

</llo_original>
